<compile_context>
chip_gen: v6e
topology: v6e:2x2x1
jax: 0.10.0
libtpu: 0.0.40
codegen_flags: <defaults>
</compile_context>

<pallas_src>
import math
import functools

import jax
import jax.numpy as jnp
from jax.experimental import pallas as pl
from jax.experimental.pallas import tpu as pltpu


def _round_up(x, m):
    return ((x + m - 1) // m) * m


def _pad2d(a, rows, cols):
    pr, pc = rows - a.shape[0], cols - a.shape[1]
    if pr or pc:
        a = jnp.pad(a, ((0, pr), (0, pc)))
    return a


def _tpu_generation():
    """Best-effort generation / VMEM probe with conservative fallbacks."""
    kind = ""
    try:
        kind = jax.devices()[0].device_kind.lower()
    except Exception:
        pass
    is_v7 = "v7" in kind
    is_v5e = ("v5 lite" in kind) or ("v5e" in kind) or ("v5litepod" in kind)
    try:
        vmem_cap = int(pltpu.get_tpu_info().vmem_capacity_bytes)
    except Exception:
        vmem_cap = (64 << 20) if is_v7 else (128 << 20)
    return {
        "kind": kind,
        "is_v7": is_v7,
        "is_v5e": is_v5e,
        "vmem_cap": vmem_cap,
        "num_tc": 2 if is_v7 else 1,
    }


def _vmem_budgets(info):
    # hard_cap: what we pass as vmem_limit_bytes (leave room for compiler internal scratch).
    # tile_budget: what the double-buffered tile footprint must fit under.
    hard_cap = max(info["vmem_cap"] - (16 << 20), 32 << 20)
    tile_budget = int(hard_cap * 0.9)
    return hard_cap, tile_budget


def _footprint_bytes(tm, th, Dp, xi, wi, oi, wbuf=2):
    """Double-buffered VMEM footprint of one grid step, incl. the (tm, th) intermediate."""
    return (
        2 * tm * Dp * xi          # x tile (double-buffered)
        + 2 * tm * Dp * oi        # out tile
        + wbuf * Dp * th * wi     # W_fc hidden slab(s)
        + wbuf * 8 * th * wi      # b_fc (sublane-padded)
        + wbuf * th * Dp * wi     # W_proj hidden slab(s)
        + 2 * 8 * Dp * wi         # b_proj
        + tm * Dp * 4             # f32 accumulator scratch
        + tm * th * 4             # f32 intermediate h
        + tm * th * wi            # cast copy of h fed to the 2nd matmul
    )


def _select_tiles(D, H, wi, info, *, tm=None, th=None, weight_buffers=2, xi=None, oi=4):
    if xi is None:
        xi = wi
    Dp = _round_up(D, 128)
    _, budget = _vmem_budgets(info)

    if tm is None:
        tm = 256 if info["is_v7"] else 512
    tm = max(8, _round_up(tm, 8))
    if th is None:
        th = 1024 if info["is_v7"] else 2048
    th = max(128, min(_round_up(th, 128), _round_up(H, 128)))

    # Shrink th first (keeps the big row tile that minimizes weight re-streaming), then tm.
    while th > 128 and _footprint_bytes(tm, th, Dp, xi, wi, oi, weight_buffers) > budget:
        th = max(128, _round_up(th // 2, 128))
    while tm > 8 and _footprint_bytes(tm, th, Dp, xi, wi, oi, weight_buffers) > budget:
        tm = max(8, _round_up(tm // 2, 8))
    return tm, th, Dp


def _mlp_kernel(x_ref, w_fc_ref, b_fc_ref, w_proj_ref, b_proj_ref, o_ref, acc_ref,
                *, approximate_gelu):
    # x_ref:      (tm, Dp)            w_fc_ref:   (Dp, th)     b_fc_ref:   (1, th)
    # w_proj_ref: (th, Dp)            b_proj_ref: (1, Dp)
    # o_ref:      (tm, Dp)            acc_ref:    (tm, Dp) f32 scratch
    k = pl.program_id(1)
    nk = pl.num_programs(1)

    @pl.when(k == 0)
    def _init():
        # Fold the c_proj bias into the accumulator init: finalize becomes a pure cast.
        acc_ref[...] = jnp.broadcast_to(
            b_proj_ref[...].astype(jnp.float32), acc_ref.shape)

    # c_fc slab: (tm, th). Native-dtype MXU operands, f32 accumulation.
    h = jnp.dot(x_ref[...], w_fc_ref[...], preferred_element_type=jnp.float32)
    h = h + b_fc_ref[...].astype(jnp.float32)

    # GELU in f32. Exact erf matches torch.nn.GELU() default; tanh variant is used
    # by default on v5e (EUP slot, frees the VALU) and is an opt-in elsewhere.
    if approximate_gelu:
        h = jax.nn.gelu(h, approximate=True)
    else:
        h = 0.5 * h * (1.0 + jax.lax.erf(h * (1.0 / math.sqrt(2.0))))

    # c_proj partial product, accumulated over the hidden axis.
    acc_ref[...] += jnp.dot(h.astype(w_proj_ref.dtype), w_proj_ref[...],
                            preferred_element_type=jnp.float32)

    @pl.when(k == nk - 1)
    def _finalize():
        # dropout: identity in eval mode
        o_ref[...] = acc_ref[...].astype(o_ref.dtype)


def prepare_mlp_params(w_fc, b_fc, w_proj, b_proj, *, tm=None, th=None,
                       compute_dtype=None, weight_buffers=2):
    """Pad / cast the weights ONCE (out of the per-call hot path).

    Weights are stored as (in, out) so the kernel computes x @ W + b.
    compute_dtype: MXU operand dtype (e.g. jnp.bfloat16); accumulation is always f32.
    """
    D, H = w_fc.shape
    assert w_proj.shape == (H, D)
    if compute_dtype is None:
        compute_dtype = w_fc.dtype
    compute_dtype = jnp.dtype(compute_dtype)

    info = _tpu_generation()
    wi = compute_dtype.itemsize
    tm_sel, th_eff, Dp = _select_tiles(D, H, wi, info, tm=tm, th=th,
                                       weight_buffers=weight_buffers)
    Hp = _round_up(H, th_eff)

    return {
        "w_fc": _pad2d(w_fc.astype(compute_dtype), Dp, Hp),
        "b_fc": _pad2d(jnp.reshape(b_fc, (1, H)).astype(compute_dtype), 1, Hp),
        "w_proj": _pad2d(w_proj.astype(compute_dtype), Hp, Dp),
        "b_proj": _pad2d(jnp.reshape(b_proj, (1, D)).astype(compute_dtype), 1, Dp),
        "D": D, "H": H, "Dp": Dp, "Hp": Hp,
        "th": th_eff, "tm_default": tm_sel,
        "compute_dtype": compute_dtype,
        "weight_buffers": weight_buffers,
    }


def mlp_pallas(x, params, *, tm=None, approximate_gelu=None):
    """x: (..., n_embd). params: output of prepare_mlp_params."""
    info = _tpu_generation()
    if approximate_gelu is None:
        approximate_gelu = bool(info["is_v5e"])   # tanh-GELU on v5e (EUP), exact erf elsewhere

    D, H = params["D"], params["H"]
    Dp, Hp, th = params["Dp"], params["Hp"], params["th"]
    cdtype = params["compute_dtype"]
    wbuf = params["weight_buffers"] or 2

    lead = x.shape[:-1]
    assert x.shape[-1] == D
    M = 1
    for s in lead:
        M *= int(s)
    out_dtype = x.dtype

    x2d = x.reshape(M, D).astype(cdtype)

    xi = wi = cdtype.itemsize
    oi = jnp.dtype(out_dtype).itemsize

    # Row tile: generation default (big tile => weights re-streamed fewer times).
    tm_eff = params["tm_default"] if tm is None else max(8, _round_up(tm, 8))
    tm_eff = min(tm_eff, _round_up(M, 8))
    # v7x: make sure both TensorCores get a row tile.
    if info["num_tc"] >= 2 and M > 8 and _round_up(M, tm_eff) // tm_eff < 2:
        tm_eff = max(8, _round_up((M + 1) // 2, 8))
    hard_cap, budget = _vmem_budgets(info)
    while tm_eff > 8 and _footprint_bytes(tm_eff, th, Dp, xi, wi, oi, wbuf) > budget:
        tm_eff = max(8, _round_up(tm_eff // 2, 8))

    Mp = _round_up(M, tm_eff)
    needs_pad = (Mp != M) or (Dp != D)
    # TODO(synk): for large ragged M, mask the last row tile instead of materializing a padded copy.
    x_p = _pad2d(x2d, Mp, Dp) if needs_pad else x2d

    grid = (Mp // tm_eff, Hp // th)
    n_row_tiles = grid[0]

    vmem_need = _footprint_bytes(tm_eff, th, Dp, xi, wi, oi, wbuf)
    vmem_limit = int(min(max(vmem_need + (8 << 20), 32 << 20), hard_cap))

    # Bytes reflect actual traffic: weights are re-streamed once per row tile.
    cost = pl.CostEstimate(
        flops=4 * M * D * H,
        transcendentals=M * H,
        bytes_accessed=int(
            Mp * Dp * xi + Mp * Dp * oi
            + n_row_tiles * (Dp * Hp * wi + Hp * Dp * wi + Hp * wi)
            + Dp * wi
        ),
    )

    w_spec_kwargs = {}
    if wbuf != 2:
        w_spec_kwargs["pipeline_mode"] = pl.Buffered(wbuf)

    kernel = functools.partial(_mlp_kernel, approximate_gelu=approximate_gelu)

    out_p = pl.pallas_call(
        kernel,
        out_shape=jax.ShapeDtypeStruct((Mp, Dp), out_dtype),
        grid_spec=pltpu.PrefetchScalarGridSpec(
            num_scalar_prefetch=0,
            grid=grid,
            in_specs=[
                pl.BlockSpec((tm_eff, Dp), lambda i, k: (i, 0)),                  # x rows
                pl.BlockSpec((Dp, th), lambda i, k: (0, k), **w_spec_kwargs),     # W_fc slab
                pl.BlockSpec((1, th), lambda i, k: (0, k)),                       # b_fc slab
                pl.BlockSpec((th, Dp), lambda i, k: (k, 0), **w_spec_kwargs),     # W_proj slab
                pl.BlockSpec((1, Dp), lambda i, k: (0, 0)),                       # b_proj
            ],
            out_specs=pl.BlockSpec((tm_eff, Dp), lambda i, k: (i, 0)),
            scratch_shapes=[pltpu.VMEM((tm_eff, Dp), jnp.float32)],
        ),
        compiler_params=pltpu.CompilerParams(
            dimension_semantics=("parallel", "arbitrary"),
            vmem_limit_bytes=vmem_limit,
        ),
        cost_estimate=cost,
    )(x_p, params["w_fc"], params["b_fc"], params["w_proj"], params["b_proj"])

    out = out_p[:M, :D] if needs_pad else out_p
    return out.reshape(*lead, D)


def init_mlp_params(key, n_embd, dtype=jnp.float32):
    """Deterministic init mimicking nn.Linear default (uniform +/- 1/sqrt(fan_in)).
    Weights are stored transposed relative to torch, i.e. as (in, out)."""
    hidden = 4 * n_embd
    k1, k2, k3, k4 = jax.random.split(key, 4)
    bound_fc = 1.0 / math.sqrt(n_embd)
    bound_pr = 1.0 / math.sqrt(hidden)
    w_fc = jax.random.uniform(k1, (n_embd, hidden), dtype, -bound_fc, bound_fc)
    b_fc = jax.random.uniform(k2, (1, hidden), dtype, -bound_fc, bound_fc)
    w_proj = jax.random.uniform(k3, (hidden, n_embd), dtype, -bound_pr, bound_pr)
    b_proj = jax.random.uniform(k4, (1, n_embd), dtype, -bound_pr, bound_pr)
    return w_fc, b_fc, w_proj, b_proj


if __name__ == "__main__":
    # Small shapes consistent with the module: batch=2, seq=8, n_embd=32 (hidden=128).
    B, T, n_embd = 2, 8, 32
    dropout_p = 0.1  # TODO(synk): dropout is a no-op here (eval-mode semantics, no PRNG mask).

    key = jax.random.PRNGKey(0)
    kx, kp = jax.random.split(key)
    x = jax.random.normal(kx, (B, T, n_embd), jnp.float32)
    w_fc, b_fc, w_proj, b_proj = init_mlp_params(kp, n_embd)

    # Reference in plain JAX (exact erf GELU, matches torch.nn.GELU() default).
    h = x.reshape(-1, n_embd) @ w_fc + b_fc
    h = 0.5 * h * (1.0 + jax.lax.erf(h / math.sqrt(2.0)))
    ref = (h @ w_proj + b_proj).reshape(B, T, n_embd)

    # 1) f32 operand path, exact GELU, tight tolerance.
    params_f32 = prepare_mlp_params(w_fc, b_fc, w_proj, b_proj)
    out = jax.block_until_ready(mlp_pallas(x, params_f32, approximate_gelu=False))
    assert out.shape == ref.shape
    assert jnp.allclose(out, ref, atol=5e-5, rtol=5e-5), "f32 mismatch vs reference"

    # 2) bf16 operand path (recommended deployment config): weights cast + padded ONCE,
    #    f32 accumulation in-kernel; looser tolerance vs the f32 reference.
    params_bf16 = prepare_mlp_params(w_fc, b_fc, w_proj, b_proj,
                                     compute_dtype=jnp.bfloat16)
    out_bf16 = jax.block_until_ready(mlp_pallas(x, params_bf16, approximate_gelu=False))
    assert jnp.allclose(out_bf16, ref, atol=5e-2, rtol=5e-2), "bf16 mismatch vs reference"

    print("KERNEL_OK")
</pallas_src>

<mosaic_0001>
module attributes {stable_mosaic.version = 11 : i64} {
  func.func @_mlp_kernel(%arg0: i32, %arg1: i32, %arg2: memref<16x128xf32, #tpu.memory_space<vmem>>, %arg3: memref<128x128xf32, #tpu.memory_space<vmem>>, %arg4: memref<1x128xf32, #tpu.memory_space<vmem>>, %arg5: memref<128x128xf32, #tpu.memory_space<vmem>>, %arg6: memref<1x128xf32, #tpu.memory_space<vmem>>, %arg7: memref<16x128xf32, #tpu.memory_space<vmem>>, %arg8: memref<16x128xf32, #tpu.memory_space<vmem>>) attributes {dimension_semantics = [#tpu.dimension_semantics<parallel>, #tpu.dimension_semantics<arbitrary>], iteration_bounds = array<i64: 1, 1>, scalar_prefetch = 0 : i64, scratch_operands = 1 : i64, tpu.core_type = #tpu.core_type<tc>, window_params = [{transform_indices = @transform_0, window_bounds = array<i64: 16, 128>}, {transform_indices = @transform_1, window_bounds = array<i64: 128, 128>}, {transform_indices = @transform_2, window_bounds = array<i64: 1, 128>}, {transform_indices = @transform_3, window_bounds = array<i64: 128, 128>}, {pipeline_mode = #tpu.pipeline_mode<synchronous>, transform_indices = @transform_4, window_bounds = array<i64: 1, 128>}, {transform_indices = @transform_5, window_bounds = array<i64: 16, 128>}]} {
    %c0_i32 = arith.constant 0 : i32
    %0 = arith.cmpi eq, %arg1, %c0_i32 : i32
    %1 = arith.extui %0 : i1 to i32
    %c0_i32_0 = arith.constant 0 : i32
    %2 = arith.cmpi ne, %1, %c0_i32_0 : i32
    scf.if %2 {
      %c0_18 = arith.constant 0 : index
      %c0_19 = arith.constant 0 : index
      %25 = vector.load %arg6[%c0_18, %c0_19] : memref<1x128xf32, #tpu.memory_space<vmem>>, vector<1x128xf32>
      %26 = vector.shape_cast %25 : vector<1x128xf32> to vector<1x128xf32>
      %27 = vector.broadcast %26 : vector<1x128xf32> to vector<16x128xf32>
      %c0_20 = arith.constant 0 : index
      %c0_21 = arith.constant 0 : index
      %28 = vector.load %arg8[%c0_20, %c0_21] : memref<16x128xf32, #tpu.memory_space<vmem>>, vector<16x128xf32>
      tpu.vector_store %arg8[%c0_20, %c0_21], %27 {strides = array<i32>} : memref<16x128xf32, #tpu.memory_space<vmem>>, vector<16x128xf32>,
    } else {
    }
    %c0 = arith.constant 0 : index
    %c0_1 = arith.constant 0 : index
    %3 = vector.load %arg2[%c0, %c0_1] : memref<16x128xf32, #tpu.memory_space<vmem>>, vector<16x128xf32>
    %c0_2 = arith.constant 0 : index
    %c0_3 = arith.constant 0 : index
    %4 = vector.load %arg3[%c0_2, %c0_3] : memref<128x128xf32, #tpu.memory_space<vmem>>, vector<128x128xf32>
    %cst = arith.constant dense<0.000000e+00> : vector<16x128xf32>
    %5 = tpu.matmul %3, %4, %cst {dimension_numbers = #tpu.dot_dimension_numbers<[1], [0], [0], [1], [0, 0, 1, 1], [], []>} : vector<16x128xf32>, vector<128x128xf32>, vector<16x128xf32> -> vector<16x128xf32>
    %c0_4 = arith.constant 0 : index
    %c0_5 = arith.constant 0 : index
    %6 = vector.load %arg4[%c0_4, %c0_5] : memref<1x128xf32, #tpu.memory_space<vmem>>, vector<1x128xf32>
    %7 = vector.broadcast %6 : vector<1x128xf32> to vector<16x128xf32>
    %8 = arith.addf %5, %7 : vector<16x128xf32>
    %cst_6 = arith.constant 5.000000e-01 : f32
    %9 = vector.broadcast %cst_6 : f32 to vector<16x128xf32>
    %10 = arith.mulf %9, %8 : vector<16x128xf32>
    %cst_7 = arith.constant 0.707106769 : f32
    %11 = vector.broadcast %cst_7 : f32 to vector<16x128xf32>
    %12 = arith.mulf %8, %11 : vector<16x128xf32>
    %13 = math.erf %12 : vector<16x128xf32>
    %cst_8 = arith.constant 1.000000e+00 : f32
    %14 = vector.broadcast %cst_8 : f32 to vector<16x128xf32>
    %15 = arith.addf %14, %13 : vector<16x128xf32>
    %16 = arith.mulf %10, %15 : vector<16x128xf32>
    %c0_9 = arith.constant 0 : index
    %c0_10 = arith.constant 0 : index
    %17 = vector.load %arg8[%c0_9, %c0_10] : memref<16x128xf32, #tpu.memory_space<vmem>>, vector<16x128xf32>
    %c0_11 = arith.constant 0 : index
    %c0_12 = arith.constant 0 : index
    %18 = vector.load %arg5[%c0_11, %c0_12] : memref<128x128xf32, #tpu.memory_space<vmem>>, vector<128x128xf32>
    %cst_13 = arith.constant dense<0.000000e+00> : vector<16x128xf32>
    %19 = tpu.matmul %16, %18, %cst_13 {dimension_numbers = #tpu.dot_dimension_numbers<[1], [0], [0], [1], [0, 0, 1, 1], [], []>} : vector<16x128xf32>, vector<128x128xf32>, vector<16x128xf32> -> vector<16x128xf32>
    %20 = arith.addf %17, %19 : vector<16x128xf32>
    %c0_14 = arith.constant 0 : index
    %c0_15 = arith.constant 0 : index
    %21 = vector.load %arg8[%c0_14, %c0_15] : memref<16x128xf32, #tpu.memory_space<vmem>>, vector<16x128xf32>
    tpu.vector_store %arg8[%c0_14, %c0_15], %20 {strides = array<i32>} : memref<16x128xf32, #tpu.memory_space<vmem>>, vector<16x128xf32>,
    %c0_i32_16 = arith.constant 0 : i32
    %22 = arith.cmpi eq, %arg1, %c0_i32_16 : i32
    %23 = arith.extui %22 : i1 to i32
    %c0_i32_17 = arith.constant 0 : i32
    %24 = arith.cmpi ne, %23, %c0_i32_17 : i32
    scf.if %24 {
      %c0_18 = arith.constant 0 : index
      %c0_19 = arith.constant 0 : index
      %25 = vector.load %arg8[%c0_18, %c0_19] : memref<16x128xf32, #tpu.memory_space<vmem>>, vector<16x128xf32>
      %c0_20 = arith.constant 0 : index
      %c0_21 = arith.constant 0 : index
      %26 = vector.load %arg7[%c0_20, %c0_21] : memref<16x128xf32, #tpu.memory_space<vmem>>, vector<16x128xf32>
      tpu.vector_store %arg7[%c0_20, %c0_21], %25 {strides = array<i32>} : memref<16x128xf32, #tpu.memory_space<vmem>>, vector<16x128xf32>,
    } else {
    }
    return
  }
  func.func @transform_0(%arg0: i32, %arg1: i32) -> (i32, i32) {
    %c0_i32 = arith.constant 0 : i32
    %c0_i32_0 = arith.constant 0 : i32
    return %arg0, %c0_i32 : i32, i32
  }
  func.func @transform_1(%arg0: i32, %arg1: i32) -> (i32, i32) {
    %c0_i32 = arith.constant 0 : i32
    %c0_i32_0 = arith.constant 0 : i32
    return %c0_i32, %arg1 : i32, i32
  }
  func.func @transform_2(%arg0: i32, %arg1: i32) -> (i32, i32) {
    %c0_i32 = arith.constant 0 : i32
    %c0_i32_0 = arith.constant 0 : i32
    return %c0_i32, %arg1 : i32, i32
  }
  func.func @transform_3(%arg0: i32, %arg1: i32) -> (i32, i32) {
    %c0_i32 = arith.constant 0 : i32
    %c0_i32_0 = arith.constant 0 : i32
    return %arg1, %c0_i32 : i32, i32
  }
  func.func @transform_4(%arg0: i32, %arg1: i32) -> (i32, i32) {
    %c0_i32 = arith.constant 0 : i32
    %c0_i32_0 = arith.constant 0 : i32
    %c0_i32_1 = arith.constant 0 : i32
    return %c0_i32, %c0_i32_0 : i32, i32
  }
  func.func @transform_5(%arg0: i32, %arg1: i32) -> (i32, i32) {
    %c0_i32 = arith.constant 0 : i32
    %c0_i32_0 = arith.constant 0 : i32
    return %arg0, %c0_i32 : i32, i32
  }
}

</mosaic_0001>

<llo_original>
// kernel: tpu_custom_call.1
$region0: #{tpu_custom_call.1}
  #allocation0 [shape = 'u32[]', space=smem, size = 0x4, offset = 0x4, fixed_abs, tag = 'smem constant byte address 0x4 - core index']
  #allocation1 [shape = 'u32[144,128]{1,0:T(1,128)}', space=vmem, size = 0x12000, scoped, tag = 'internal scratch']
  #allocation2 [shape = 'f32[16,128]{1,0:T(8,128)}', space=vmem, size = 0x2000, scoped, tag = 'scratch operand']
  %s0 = inlined_call_operand.hbm [shape: f32[16,128], index: 0, kind: input, shape index: {}]
  %s1 = inlined_call_operand.hbm [shape: f32[128,128], index: 1, kind: input, shape index: {}]
  %s2 = inlined_call_operand.vmem [shape: f32[1,128], index: 2, kind: input, shape index: {}]
  %s3 = inlined_call_operand.hbm [shape: f32[128,128], index: 3, kind: input, shape index: {}]
  %s4 = inlined_call_operand.vmem [shape: f32[1,128], index: 4, kind: input, shape index: {}]
  %s5 = inlined_call_operand.hbm [shape: f32[16,128], index: 5, kind: output, shape index: {}]
  %s6 = sld [smem:[#allocation0]]
  $region50: #{tpu_custom_call.1} parent=0
    _
  %s8 = ssub.s32 1, %s6
  %s9 = scalar_select 0, %s8, %s6
  $region1: #{tpu_custom_call.1} parent=0
    #allocation3 [shape = 'u8[8192]{0}', space=vmem, size = 0x2000, scoped, tag = 'input window, operand 0, single buffered']
    #allocation4 [shape = 's32[1]{0}', space=sflag, size = 0x4, scoped, tag = 'scoped memory for tpu_custom_call.1']
    #allocation5 [shape = 's32[1]{0}', space=sflag, size = 0x4, scoped, tag = 'scoped memory for tpu_custom_call.1']
    #allocation6 [shape = 'u8[65536]{0}', space=vmem, size = 0x10000, scoped, tag = 'input window, operand 1, single buffered']
    #allocation7 [shape = 's32[1]{0}', space=sflag, size = 0x4, scoped, tag = 'scoped memory for tpu_custom_call.1']
    #allocation8 [shape = 'u8[65536]{0}', space=vmem, size = 0x10000, scoped, tag = 'input window, operand 3, single buffered']
    #allocation9 [shape = 'u8[8192]{0}', space=vmem, size = 0x2000, scoped, tag = 'output window, operand 0, single buffered']
    %10 = vsyncpa [#allocation4], 0
    %11 = vsyncpa [#allocation7], 0
    %12 = vsyncpa [#allocation5], 0
    // Predicated region
    $region2: #{tpu_custom_call.1} parent=1 // pred_check
      _
    $region3: #{tpu_custom_call.1} parent=1 // pred_check_branch
      %14 = sbr.rel (0) target = $region5
    $region4: #{tpu_custom_call.1} parent=1 // pred_region
      %s16 = ssub.s32 256, 256
      %17 = vsyncadd [#allocation4], %s16
      %s18 = sshll.u32 [#allocation3], 4
      %s19 = int_to_ptr.vmem [resolvable:$true] %s18
      %24 = dma.hbm_to_vmem [thread:$0]  %s0, 256, %s19, [#allocation4], 128, 128, 8
    $region5: #{tpu_custom_call.1} parent=1 // pred_fallthru
      _
    // Predicated region
    $region6: #{tpu_custom_call.1} parent=1 // pred_check
      _
    $region7: #{tpu_custom_call.1} parent=1 // pred_check_branch
      %26 = sbr.rel (0) target = $region9
    $region8: #{tpu_custom_call.1} parent=1 // pred_region
      %s28 = ssub.s32 2048, 2048
      %29 = vsyncadd [#allocation7], %s28
      %s30 = sshll.u32 [#allocation6], 4
      %s31 = int_to_ptr.vmem [resolvable:$true] %s30
      %36 = dma.hbm_to_vmem [thread:$0]  %s1, 2048, %s31, [#allocation7], 128, 128, 8
    $region9: #{tpu_custom_call.1} parent=1 // pred_fallthru
      _
    // Predicated region
    $region10: #{tpu_custom_call.1} parent=1 // pred_check
      _
    $region11: #{tpu_custom_call.1} parent=1 // pred_check_branch
      %38 = sbr.rel (0) target = $region13
    $region12: #{tpu_custom_call.1} parent=1 // pred_region
      _
    $region13: #{tpu_custom_call.1} parent=1 // pred_fallthru
      _
    // Predicated region
    $region14: #{tpu_custom_call.1} parent=1 // pred_check
      _
    $region15: #{tpu_custom_call.1} parent=1 // pred_check_branch
      %40 = sbr.rel (0) target = $region17
    $region16: #{tpu_custom_call.1} parent=1 // pred_region
      %s42 = ssub.s32 2048, 2048
      %43 = vsyncadd [#allocation7], %s42
      %s44 = sshll.u32 [#allocation8], 4
      %s45 = int_to_ptr.vmem [resolvable:$true] %s44
      %50 = dma.hbm_to_vmem [thread:$0]  %s3, 2048, %s45, [#allocation7], 128, 128, 8
    $region17: #{tpu_custom_call.1} parent=1 // pred_fallthru
      _
    // Predicated region
    $region18: #{tpu_custom_call.1} parent=1 // pred_check
      _
    $region19: #{tpu_custom_call.1} parent=1 // pred_check_branch
      %52 = sbr.rel (0) target = $region21
    $region20: #{tpu_custom_call.1} parent=1 // pred_region
      _
    $region21: #{tpu_custom_call.1} parent=1 // pred_fallthru
      _
    // Predicated region
    $region22: #{tpu_custom_call.1} parent=1 // pred_check
      _
    $region23: #{tpu_custom_call.1} parent=1 // pred_check_branch
      %54 = sbr.rel (0) target = $region25
    $region24: #{tpu_custom_call.1} parent=1 // pred_region
      %55 = dma.done [#allocation4], 256
    $region25: #{tpu_custom_call.1} parent=1 // pred_fallthru
      _
    // Predicated region
    $region26: #{tpu_custom_call.1} parent=1 // pred_check
      _
    $region27: #{tpu_custom_call.1} parent=1 // pred_check_branch
      %57 = sbr.rel (0) target = $region29
    $region28: #{tpu_custom_call.1} parent=1 // pred_region
      %58 = dma.done [#allocation7], 2048
    $region29: #{tpu_custom_call.1} parent=1 // pred_fallthru
      _
    // Predicated region
    $region30: #{tpu_custom_call.1} parent=1 // pred_check
      _
    $region31: #{tpu_custom_call.1} parent=1 // pred_check_branch
      %60 = sbr.rel (0) target = $region33
    $region32: #{tpu_custom_call.1} parent=1 // pred_region
      %61 = dma.done [#allocation7], 2048
    $region33: #{tpu_custom_call.1} parent=1 // pred_fallthru
      _
    %p62 = scmp.eq.s32.totalorder 0, 0
    // Predicated region
    $region34: #{tpu_custom_call.1} parent=1 // pred_check
      %p63 = pneg %p62
    $region35: #{tpu_custom_call.1} parent=1 // pred_check_branch
      %65 = sbr.rel (%p63) target = $region37
    $region36: #{tpu_custom_call.1} parent=1 // pred_region
      %v66 = vld [vmem:[%s4] sm:$0x1]
      %v68 = vlaneseq
      %v69 = vshrl.u32 %v68, 7
      %v70 = vsub.s32 0, %v69
      %v71 = vrot.slane %v66, %v70
      %73 = vst [vmem:[#allocation2] sm:$0xff] %v71
      %74 = vst [vmem:[#allocation2 + $0x8] sm:$0xff] %v71
    $region37: #{tpu_custom_call.1} parent=1 // pred_fallthru
      _
    %v75 = vld [vmem:[#allocation3] sm:$0xff]
    %v76 = vld [vmem:[#allocation3 + $0x8] sm:$0xff]
    %v77 = vld [vmem:[#allocation6] sm:$0xff]
    %v78 = vld [vmem:[#allocation6 + $0x8] sm:$0xff]
    %v79 = vld [vmem:[#allocation6 + $0x10] sm:$0xff]
    %v80 = vld [vmem:[#allocation6 + $0x18] sm:$0xff]
    %v81 = vld [vmem:[#allocation6 + $0x20] sm:$0xff]
    %v82 = vld [vmem:[#allocation6 + $0x28] sm:$0xff]
    %v83 = vld [vmem:[#allocation6 + $0x30] sm:$0xff]
    %v84 = vld [vmem:[#allocation6 + $0x38] sm:$0xff]
    %v85 = vld [vmem:[#allocation6 + $0x40] sm:$0xff]
    %v86 = vld [vmem:[#allocation6 + $0x48] sm:$0xff]
    %v87 = vld [vmem:[#allocation6 + $0x50] sm:$0xff]
    %v88 = vld [vmem:[#allocation6 + $0x58] sm:$0xff]
    %v89 = vld [vmem:[#allocation6 + $0x60] sm:$0xff]
    %v90 = vld [vmem:[#allocation6 + $0x68] sm:$0xff]
    %v91 = vld [vmem:[#allocation6 + $0x70] sm:$0xff]
    %v92 = vld [vmem:[#allocation6 + $0x78] sm:$0xff]
    %v93 = vld [vmem:[%s2] sm:$0x1]
    %v95 = vlaneseq
    %v96 = vshrl.u32 %v95, 7
    %v97 = vsub.s32 0, %v96
    %v98 = vrot.slane %v93, %v97
    %100 = vmatprep.subr.mxu0 0.0
    %101 = vmatpush1.msra.mxu0 %v92
    %102 = vmatprep.subr.mxu0 0.0
    %103 = vmatpush1.msra.mxu0 %v91
    %104 = vmatprep.subr.mxu0 0.0
    %105 = vmatpush1.msra.mxu0 %v90
    %106 = vmatprep.subr.mxu0 0.0
    %107 = vmatpush1.msra.mxu0 %v89
    %108 = vmatprep.subr.mxu0 0.0
    %109 = vmatpush1.msra.mxu0 %v88
    %110 = vmatprep.subr.mxu0 0.0
    %111 = vmatpush1.msra.mxu0 %v87
    %112 = vmatprep.subr.mxu0 0.0
    %113 = vmatpush1.msra.mxu0 %v86
    %114 = vmatprep.subr.mxu0 0.0
    %115 = vmatpush1.msra.mxu0 %v85
    %116 = vmatprep.subr.mxu0 0.0
    %117 = vmatpush1.msra.mxu0 %v84
    %118 = vmatprep.subr.mxu0 0.0
    %119 = vmatpush1.msra.mxu0 %v83
    %120 = vmatprep.subr.mxu0 0.0
    %121 = vmatpush1.msra.mxu0 %v82
    %122 = vmatprep.subr.mxu0 0.0
    %123 = vmatpush1.msra.mxu0 %v81
    %124 = vmatprep.subr.mxu0 0.0
    %125 = vmatpush1.msra.mxu0 %v80
    %126 = vmatprep.subr.mxu0 0.0
    %127 = vmatpush1.msra.mxu0 %v79
    %128 = vmatprep.subr.mxu0 0.0
    %129 = vmatpush1.msra.mxu0 %v78
    %130 = vmatprep.subr.mxu0 0.0
    %131 = vmatpush1.msra.mxu0 %v77
    %132 = vmatprep.subr.mxu0 0.0
    %133 = vmatpush2.msra.mxu0 0.0
    %134 = vmatprep.subr.mxu0 0.0
    %135 = vmatpush2.msra.mxu0 0.0
    %136 = vmatprep.subr.mxu0 0.0
    %137 = vmatpush2.msra.mxu0 0.0
    %138 = vmatprep.subr.mxu0 0.0
    %139 = vmatpush2.msra.mxu0 0.0
    %140 = vmatprep.subr.mxu0 0.0
    %141 = vmatpush2.msra.mxu0 0.0
    %142 = vmatprep.subr.mxu0 0.0
    %143 = vmatpush2.msra.mxu0 0.0
    %144 = vmatprep.subr.mxu0 0.0
    %145 = vmatpush2.msra.mxu0 0.0
    %146 = vmatprep.subr.mxu0 0.0
    %147 = vmatpush2.msra.mxu0 0.0
    %148 = vmatprep.subr.mxu0 0.0
    %149 = vmatpush2.msra.mxu0 0.0
    %150 = vmatprep.subr.mxu0 0.0
    %151 = vmatpush2.msra.mxu0 0.0
    %152 = vmatprep.subr.mxu0 0.0
    %153 = vmatpush2.msra.mxu0 0.0
    %154 = vmatprep.subr.mxu0 0.0
    %155 = vmatpush2.msra.mxu0 0.0
    %156 = vmatprep.subr.mxu0 0.0
    %157 = vmatpush2.msra.mxu0 0.0
    %158 = vmatprep.subr.mxu0 0.0
    %159 = vmatpush2.msra.mxu0 0.0
    %160 = vmatprep.subr.mxu0 0.0
    %161 = vmatpush2.msra.mxu0 0.0
    %162 = vmatprep.subr.mxu0 0.0
    %163 = vmatpush2.msra.mxu0 0.0
    %164 = vmatprep.mubr.f32.mxu0 0.0
    %165 = vmatmul.mubr.f32.gmra.mxu0 %v75
    %v166 = vpop.f32.mrf.mxu0
    %v167 = vadd.f32 %v98, %v166
    %v168 = vpop.f32.mrf.mxu0
    %169 = vmatprep.mubr.f32.mxu0 0.0
    %170 = vmatmul.mubr.f32.gmra.mxu0 %v76
    %v171 = vpop.f32.mrf.mxu0
    %v172 = vadd.f32 %v98, %v171
    %v173 = vpop.f32.mrf.mxu0
    %174 = vdwg.mxu0
    %v175 = vmul.f32 %v167, 0.5
    %v176 = vmul.f32 %v172, 0.5
    %v177 = vmul.f32 %v167, 0.70710677
    %v178 = vmul.f32 %v172, 0.70710677
    %v179 = verf.f32.pop %v177
    %v180 = verf.f32.pop %v178
    %v181 = vadd.f32 %v179, 1.0
    %v182 = vadd.f32 %v180, 1.0
    %v183 = vmul.f32 %v175, %v181
    %v184 = vmul.f32 %v176, %v182
    %v185 = vld [vmem:[#allocation2] sm:$0xff]
    %v186 = vld [vmem:[#allocation2 + $0x8] sm:$0xff]
    %v187 = vld [vmem:[#allocation8] sm:$0xff]
    %v188 = vld [vmem:[#allocation8 + $0x8] sm:$0xff]
    %v189 = vld [vmem:[#allocation8 + $0x10] sm:$0xff]
    %v190 = vld [vmem:[#allocation8 + $0x18] sm:$0xff]
    %v191 = vld [vmem:[#allocation8 + $0x20] sm:$0xff]
    %v192 = vld [vmem:[#allocation8 + $0x28] sm:$0xff]
    %v193 = vld [vmem:[#allocation8 + $0x30] sm:$0xff]
    %v194 = vld [vmem:[#allocation8 + $0x38] sm:$0xff]
    %v195 = vld [vmem:[#allocation8 + $0x40] sm:$0xff]
    %v196 = vld [vmem:[#allocation8 + $0x48] sm:$0xff]
    %v197 = vld [vmem:[#allocation8 + $0x50] sm:$0xff]
    %v198 = vld [vmem:[#allocation8 + $0x58] sm:$0xff]
    %v199 = vld [vmem:[#allocation8 + $0x60] sm:$0xff]
    %v200 = vld [vmem:[#allocation8 + $0x68] sm:$0xff]
    %v201 = vld [vmem:[#allocation8 + $0x70] sm:$0xff]
    %v202 = vld [vmem:[#allocation8 + $0x78] sm:$0xff]
    %203 = vmatprep.subr.mxu0 0.0
    %204 = vmatpush1.msra.mxu0 %v202
    %205 = vmatprep.subr.mxu0 0.0
    %206 = vmatpush1.msra.mxu0 %v201
    %207 = vmatprep.subr.mxu0 0.0
    %208 = vmatpush1.msra.mxu0 %v200
    %209 = vmatprep.subr.mxu0 0.0
    %210 = vmatpush1.msra.mxu0 %v199
    %211 = vmatprep.subr.mxu0 0.0
    %212 = vmatpush1.msra.mxu0 %v198
    %213 = vmatprep.subr.mxu0 0.0
    %214 = vmatpush1.msra.mxu0 %v197
    %215 = vmatprep.subr.mxu0 0.0
    %216 = vmatpush1.msra.mxu0 %v196
    %217 = vmatprep.subr.mxu0 0.0
    %218 = vmatpush1.msra.mxu0 %v195
    %219 = vmatprep.subr.mxu0 0.0
    %220 = vmatpush1.msra.mxu0 %v194
    %221 = vmatprep.subr.mxu0 0.0
    %222 = vmatpush1.msra.mxu0 %v193
    %223 = vmatprep.subr.mxu0 0.0
    %224 = vmatpush1.msra.mxu0 %v192
    %225 = vmatprep.subr.mxu0 0.0
    %226 = vmatpush1.msra.mxu0 %v191
    %227 = vmatprep.subr.mxu0 0.0
    %228 = vmatpush1.msra.mxu0 %v190
    %229 = vmatprep.subr.mxu0 0.0
    %230 = vmatpush1.msra.mxu0 %v189
    %231 = vmatprep.subr.mxu0 0.0
    %232 = vmatpush1.msra.mxu0 %v188
    %233 = vmatprep.subr.mxu0 0.0
    %234 = vmatpush1.msra.mxu0 %v187
    %235 = vmatprep.subr.mxu0 0.0
    %236 = vmatpush2.msra.mxu0 0.0
    %237 = vmatprep.subr.mxu0 0.0
    %238 = vmatpush2.msra.mxu0 0.0
    %239 = vmatprep.subr.mxu0 0.0
    %240 = vmatpush2.msra.mxu0 0.0
    %241 = vmatprep.subr.mxu0 0.0
    %242 = vmatpush2.msra.mxu0 0.0
    %243 = vmatprep.subr.mxu0 0.0
    %244 = vmatpush2.msra.mxu0 0.0
    %245 = vmatprep.subr.mxu0 0.0
    %246 = vmatpush2.msra.mxu0 0.0
    %247 = vmatprep.subr.mxu0 0.0
    %248 = vmatpush2.msra.mxu0 0.0
    %249 = vmatprep.subr.mxu0 0.0
    %250 = vmatpush2.msra.mxu0 0.0
    %251 = vmatprep.subr.mxu0 0.0
    %252 = vmatpush2.msra.mxu0 0.0
    %253 = vmatprep.subr.mxu0 0.0
    %254 = vmatpush2.msra.mxu0 0.0
    %255 = vmatprep.subr.mxu0 0.0
    %256 = vmatpush2.msra.mxu0 0.0
    %257 = vmatprep.subr.mxu0 0.0
    %258 = vmatpush2.msra.mxu0 0.0
    %259 = vmatprep.subr.mxu0 0.0
    %260 = vmatpush2.msra.mxu0 0.0
    %261 = vmatprep.subr.mxu0 0.0
    %262 = vmatpush2.msra.mxu0 0.0
    %263 = vmatprep.subr.mxu0 0.0
    %264 = vmatpush2.msra.mxu0 0.0
    %265 = vmatprep.subr.mxu0 0.0
    %266 = vmatpush2.msra.mxu0 0.0
    %267 = vmatprep.mubr.f32.mxu0 0.0
    %268 = vmatmul.mubr.f32.gmra.mxu0 %v183
    %v269 = vpop.f32.mrf.mxu0
    %v270 = vadd.f32 0.0, %v269
    %v271 = vpop.f32.mrf.mxu0
    %272 = vmatprep.mubr.f32.mxu0 0.0
    %273 = vmatmul.mubr.f32.gmra.mxu0 %v184
    %v274 = vpop.f32.mrf.mxu0
    %v275 = vadd.f32 0.0, %v274
    %v276 = vpop.f32.mrf.mxu0
    %277 = vdwg.mxu0
    %v278 = vadd.f32 %v185, %v270
    %v279 = vadd.f32 %v186, %v275
    %280 = vst [vmem:[#allocation2] sm:$0xff] %v278
    %281 = vst [vmem:[#allocation2 + $0x8] sm:$0xff] %v279
    // Predicated region
    $region38: #{tpu_custom_call.1} parent=1 // pred_check
      %p282 = pneg %p62
    $region39: #{tpu_custom_call.1} parent=1 // pred_check_branch
      %284 = sbr.rel (%p282) target = $region41
    $region40: #{tpu_custom_call.1} parent=1 // pred_region
      %v285 = vld [vmem:[#allocation2] sm:$0xff]
      %v286 = vld [vmem:[#allocation2 + $0x8] sm:$0xff]
      %287 = vst [vmem:[#allocation9] sm:$0xff] %v285
      %288 = vst [vmem:[#allocation9 + $0x8] sm:$0xff] %v286
    $region41: #{tpu_custom_call.1} parent=1 // pred_fallthru
      _
    // Predicated region
    $region42: #{tpu_custom_call.1} parent=1 // pred_check
      _
    $region43: #{tpu_custom_call.1} parent=1 // pred_check_branch
      %290 = sbr.rel (0) target = $region45
    $region44: #{tpu_custom_call.1} parent=1 // pred_region
      %s292 = ssub.s32 256, 256
      %293 = vsyncadd [#allocation5], %s292
      %s294 = sshll.u32 [#allocation9], 4
      %s295 = int_to_ptr.vmem [resolvable:$true] %s294
      %300 = dma.vmem_to_hbm [thread:$0]  %s295, 256, %s5, [#allocation5], 128, 128, 8
    $region45: #{tpu_custom_call.1} parent=1 // pred_fallthru
      _
    // Predicated region
    $region46: #{tpu_custom_call.1} parent=1 // pred_check
      _
    $region47: #{tpu_custom_call.1} parent=1 // pred_check_branch
      %302 = sbr.rel (0) target = $region49
    $region48: #{tpu_custom_call.1} parent=1 // pred_region
      %303 = dma.done [#allocation5], 256
    $region49: #{tpu_custom_call.1} parent=1 // pred_fallthru
      _
    %304 = vsyncpa [#allocation4], 1
    %305 = vsyncpa [#allocation7], 1
    %306 = vsyncpa [#allocation5], 1

</llo_original>
